<compile_context>
chip_gen: v7x
topology: tpu7x:2x2x1
jax: 0.10.0
libtpu: 0.0.40
codegen_flags: <defaults>
</compile_context>

<pallas_src>
import jax
import jax.numpy as jnp
from jax.experimental import pallas as pl
from jax.experimental.pallas import tpu as pltpu


def _round_up(x, m):
    return ((x + m - 1) // m) * m


def _min_sublane(dtype) -> int:
    # Minimum second-to-last block dim for a given element width (f32/bf16/int8).
    return {4: 8, 2: 16, 1: 32}.get(jnp.dtype(dtype).itemsize, 8)


def _pick_ti(intermediate, ti_max):
    """Largest multiple of 128 that is <= ti_max and divides `intermediate`."""
    ti = min(_round_up(ti_max, 128), intermediate)
    while ti > 128 and intermediate % ti != 0:
        ti -= 128
    if intermediate % ti != 0:
        ti = intermediate
    return ti


def qwen_mlp_kernel(x_ref, wg_ref, wu_ref, wd_ref, o_ref, acc_ref):
    """One (token-tile i, intermediate-tile j) step:
       acc += (silu(x @ Wg_j) * (x @ Wu_j)) @ Wd_j ;  write o at the last j."""
    j = pl.program_id(1)

    @pl.when(j == 0)
    def _():
        acc_ref[...] = jnp.zeros_like(acc_ref)

    x = x_ref[...]
    gate = jnp.dot(x, wg_ref[...], preferred_element_type=jnp.float32)
    up = jnp.dot(x, wu_ref[...], preferred_element_type=jnp.float32)

    # SiluAndMul in f32 (EUP sigmoid + VPU multiplies).
    act = gate * jax.nn.sigmoid(gate) * up

    # Cast back to the weight dtype (bf16 in real models) for the fast MXU path.
    acc_ref[...] += jnp.dot(act.astype(wd_ref.dtype), wd_ref[...],
                            preferred_element_type=jnp.float32)

    @pl.when(j == pl.num_programs(1) - 1)
    def _():
        o_ref[...] = acc_ref[...].astype(o_ref.dtype)


def qwen_mlp(x, w_gate_up, w_down, *, tm=256, ti=512):
    """x: [T, H]; w_gate_up: [H, 2*I] (merged column-parallel); w_down: [I, H]."""
    T, H = x.shape
    two_i = w_gate_up.shape[1]
    I = two_i // 2
    assert w_gate_up.shape == (H, two_i)
    assert w_down.shape == (I, H)
    # Gate/up halves are addressed by lane-aligned column blocks of the merged
    # weight, so I must be lane aligned (true for real Qwen: 11008 = 86*128).
    assert I % 128 == 0, "intermediate size must be a multiple of 128"

    # --- tile selection ------------------------------------------------------
    sub = max(_min_sublane(x.dtype), _min_sublane(w_gate_up.dtype))
    tm = max(sub, min(_round_up(tm, sub), _round_up(T, sub)))
    ti = _pick_ti(I, ti)

    # Pad the token axis so the grid covers it exactly; zero rows give zero
    # outputs and are sliced off at the end.
    T_pad = _round_up(T, tm)
    x_in = jnp.pad(x, ((0, T_pad - T), (0, 0))) if T_pad != T else x

    n_tok = T_pad // tm
    n_int = I // ti

    # --- VMEM budget (double-buffered tiles + accumulator) --------------------
    wbytes = jnp.dtype(w_gate_up.dtype).itemsize
    xbytes = jnp.dtype(x.dtype).itemsize
    vmem_need = (
        2 * (2 * H * ti + ti * H) * wbytes   # W_gate, W_up, W_down tiles (x2 bufs)
        + 2 * tm * H * xbytes                # x tile (x2 bufs)
        + 2 * tm * H * xbytes                # output tile (x2 bufs)
        + tm * H * 4                         # f32 accumulator scratch
        + 3 * tm * ti * 4                    # transient gate/up/act values
    )
    # Stay conservative: never request more than 96 MiB (and v7x-sized configs
    # with the default tiles stay well under 64 MiB by construction).
    vmem_limit = int(max(32 << 20, min(vmem_need + (4 << 20), 96 << 20)))

    cost = pl.CostEstimate(
        flops=6 * T * H * I,                 # 2*T*H*(2I) + 2*T*I*H
        transcendentals=T * I,               # sigmoid
        bytes_accessed=int(x.size * xbytes + w_gate_up.size * wbytes
                           + w_down.size * wbytes + T * H * xbytes),
    )

    out = pl.pallas_call(
        qwen_mlp_kernel,
        out_shape=jax.ShapeDtypeStruct((T_pad, H), x.dtype),
        grid_spec=pltpu.PrefetchScalarGridSpec(
            num_scalar_prefetch=0,
            grid=(n_tok, n_int),
            in_specs=[
                pl.BlockSpec((tm, H), lambda i, j: (i, 0)),            # x tile
                # Merged gate/up weight is passed twice (same HBM buffer, no
                # host split): gate half = column block j, up half = column
                # block j + I//ti (i.e. element offset I + j*ti).
                pl.BlockSpec((H, ti), lambda i, j: (0, j)),             # W_gate
                pl.BlockSpec((H, ti), lambda i, j: (0, j + n_int)),     # W_up
                pl.BlockSpec((ti, H), lambda i, j: (j, 0)),             # W_down
            ],
            out_specs=pl.BlockSpec((tm, H), lambda i, j: (i, 0)),
            scratch_shapes=[pltpu.VMEM((tm, H), jnp.float32)],
        ),
        compiler_params=pltpu.CompilerParams(
            dimension_semantics=("parallel", "arbitrary"),
            vmem_limit_bytes=vmem_limit,
        ),
        cost_estimate=cost,
    )(x_in, w_gate_up, w_gate_up, w_down)

    return out[:T] if T_pad != T else out


def qwen_mlp_ref(x, w_gate_up, w_down):
    """Pure-JAX reference mirroring the PyTorch forward."""
    gate_up = jnp.dot(x, w_gate_up, preferred_element_type=jnp.float32)
    I = w_down.shape[0]
    gate, up = gate_up[:, :I], gate_up[:, I:]
    act = jax.nn.silu(gate) * up
    return jnp.dot(act, w_down, preferred_element_type=jnp.float32).astype(x.dtype)


if __name__ == "__main__":
    # Small, module-consistent shapes: tokens=8, hidden=128, intermediate=256.
    T, H, I = 8, 128, 256
    key = jax.random.PRNGKey(0)
    kx, kgu, kd = jax.random.split(key, 3)

    x = jax.random.normal(kx, (T, H), dtype=jnp.float32)
    # gate_up_proj: MergedColumnParallelLinear(hidden, [I, I], bias=False)
    w_gate_up = jax.random.normal(kgu, (H, 2 * I), dtype=jnp.float32) * 0.05
    # c_proj: RowParallelLinear(I, hidden, bias=False)
    w_down = jax.random.normal(kd, (I, H), dtype=jnp.float32) * 0.05

    # Default tiles (clamped to the tiny problem).
    out = jax.block_until_ready(qwen_mlp(x, w_gate_up, w_down))
    ref = qwen_mlp_ref(x, w_gate_up, w_down)
    assert out.shape == (T, H)
    assert jnp.allclose(out, ref, atol=2e-3, rtol=2e-3), (
        f"mismatch vs reference: max abs diff {jnp.max(jnp.abs(out - ref))}")

    # Exercise token padding + multiple intermediate tiles (accumulator path).
    T2 = 13
    x2 = jax.random.normal(jax.random.PRNGKey(1), (T2, H), dtype=jnp.float32)
    out2 = jax.block_until_ready(qwen_mlp(x2, w_gate_up, w_down, tm=8, ti=128))
    ref2 = qwen_mlp_ref(x2, w_gate_up, w_down)
    assert out2.shape == (T2, H)
    assert jnp.allclose(out2, ref2, atol=2e-3, rtol=2e-3), (
        f"mismatch (padded/tiled) max abs diff {jnp.max(jnp.abs(out2 - ref2))}")

    print("KERNEL_OK")
</pallas_src>

<mosaic_0001>
module attributes {stable_mosaic.version = 11 : i64} {
  func.func @qwen_mlp_kernel(%arg0: i32, %arg1: i32, %arg2: memref<8x128xf32, #tpu.memory_space<vmem>>, %arg3: memref<128x256xf32, #tpu.memory_space<vmem>>, %arg4: memref<128x256xf32, #tpu.memory_space<vmem>>, %arg5: memref<256x128xf32, #tpu.memory_space<vmem>>, %arg6: memref<8x128xf32, #tpu.memory_space<vmem>>, %arg7: memref<8x128xf32, #tpu.memory_space<vmem>>) attributes {dimension_semantics = [#tpu.dimension_semantics<parallel>, #tpu.dimension_semantics<arbitrary>], iteration_bounds = array<i64: 1, 1>, scalar_prefetch = 0 : i64, scratch_operands = 1 : i64, tpu.core_type = #tpu.core_type<tc>, window_params = [{transform_indices = @transform_0, window_bounds = array<i64: 8, 128>}, {transform_indices = @transform_1, window_bounds = array<i64: 128, 256>}, {transform_indices = @transform_2, window_bounds = array<i64: 128, 256>}, {transform_indices = @transform_3, window_bounds = array<i64: 256, 128>}, {transform_indices = @transform_4, window_bounds = array<i64: 8, 128>}]} {
    %c0_i32 = arith.constant 0 : i32
    %0 = arith.cmpi eq, %arg1, %c0_i32 : i32
    %1 = arith.extui %0 : i1 to i32
    %c0_i32_0 = arith.constant 0 : i32
    %2 = arith.cmpi ne, %1, %c0_i32_0 : i32
    scf.if %2 {
      %cst_17 = arith.constant 0.000000e+00 : f32
      %23 = vector.broadcast %cst_17 : f32 to vector<8x128xf32>
      %c0_18 = arith.constant 0 : index
      %c0_19 = arith.constant 0 : index
      %24 = vector.load %arg7[%c0_18, %c0_19] : memref<8x128xf32, #tpu.memory_space<vmem>>, vector<8x128xf32>
      tpu.vector_store %arg7[%c0_18, %c0_19], %23 {strides = array<i32>} : memref<8x128xf32, #tpu.memory_space<vmem>>, vector<8x128xf32>,
    } else {
    }
    %c0 = arith.constant 0 : index
    %c0_1 = arith.constant 0 : index
    %3 = vector.load %arg2[%c0, %c0_1] : memref<8x128xf32, #tpu.memory_space<vmem>>, vector<8x128xf32>
    %c0_2 = arith.constant 0 : index
    %c0_3 = arith.constant 0 : index
    %4 = vector.load %arg3[%c0_2, %c0_3] : memref<128x256xf32, #tpu.memory_space<vmem>>, vector<128x256xf32>
    %cst = arith.constant dense<0.000000e+00> : vector<8x256xf32>
    %5 = tpu.matmul %3, %4, %cst {dimension_numbers = #tpu.dot_dimension_numbers<[1], [0], [0], [1], [0, 0, 1, 1], [], []>} : vector<8x128xf32>, vector<128x256xf32>, vector<8x256xf32> -> vector<8x256xf32>
    %c0_4 = arith.constant 0 : index
    %c0_5 = arith.constant 0 : index
    %6 = vector.load %arg4[%c0_4, %c0_5] : memref<128x256xf32, #tpu.memory_space<vmem>>, vector<128x256xf32>
    %cst_6 = arith.constant dense<0.000000e+00> : vector<8x256xf32>
    %7 = tpu.matmul %3, %6, %cst_6 {dimension_numbers = #tpu.dot_dimension_numbers<[1], [0], [0], [1], [0, 0, 1, 1], [], []>} : vector<8x128xf32>, vector<128x256xf32>, vector<8x256xf32> -> vector<8x256xf32>
    %8 = arith.negf %5 : vector<8x256xf32>
    %9 = math.exp %8 : vector<8x256xf32>
    %cst_7 = arith.constant 1.000000e+00 : f32
    %10 = vector.broadcast %cst_7 : f32 to vector<8x256xf32>
    %11 = arith.addf %10, %9 : vector<8x256xf32>
    %12 = arith.divf %10, %11 : vector<8x256xf32>
    %13 = arith.mulf %5, %12 : vector<8x256xf32>
    %14 = arith.mulf %13, %7 : vector<8x256xf32>
    %c0_8 = arith.constant 0 : index
    %c0_9 = arith.constant 0 : index
    %15 = vector.load %arg7[%c0_8, %c0_9] : memref<8x128xf32, #tpu.memory_space<vmem>>, vector<8x128xf32>
    %c0_10 = arith.constant 0 : index
    %c0_11 = arith.constant 0 : index
    %16 = vector.load %arg5[%c0_10, %c0_11] : memref<256x128xf32, #tpu.memory_space<vmem>>, vector<256x128xf32>
    %cst_12 = arith.constant dense<0.000000e+00> : vector<8x128xf32>
    %17 = tpu.matmul %14, %16, %cst_12 {dimension_numbers = #tpu.dot_dimension_numbers<[1], [0], [0], [1], [0, 0, 1, 1], [], []>} : vector<8x256xf32>, vector<256x128xf32>, vector<8x128xf32> -> vector<8x128xf32>
    %18 = arith.addf %15, %17 : vector<8x128xf32>
    %c0_13 = arith.constant 0 : index
    %c0_14 = arith.constant 0 : index
    %19 = vector.load %arg7[%c0_13, %c0_14] : memref<8x128xf32, #tpu.memory_space<vmem>>, vector<8x128xf32>
    tpu.vector_store %arg7[%c0_13, %c0_14], %18 {strides = array<i32>} : memref<8x128xf32, #tpu.memory_space<vmem>>, vector<8x128xf32>,
    %c0_i32_15 = arith.constant 0 : i32
    %20 = arith.cmpi eq, %arg1, %c0_i32_15 : i32
    %21 = arith.extui %20 : i1 to i32
    %c0_i32_16 = arith.constant 0 : i32
    %22 = arith.cmpi ne, %21, %c0_i32_16 : i32
    scf.if %22 {
      %c0_17 = arith.constant 0 : index
      %c0_18 = arith.constant 0 : index
      %23 = vector.load %arg7[%c0_17, %c0_18] : memref<8x128xf32, #tpu.memory_space<vmem>>, vector<8x128xf32>
      %c0_19 = arith.constant 0 : index
      %c0_20 = arith.constant 0 : index
      %24 = vector.load %arg6[%c0_19, %c0_20] : memref<8x128xf32, #tpu.memory_space<vmem>>, vector<8x128xf32>
      tpu.vector_store %arg6[%c0_19, %c0_20], %23 {strides = array<i32>} : memref<8x128xf32, #tpu.memory_space<vmem>>, vector<8x128xf32>,
    } else {
    }
    return
  }
  func.func @transform_0(%arg0: i32, %arg1: i32) -> (i32, i32) {
    %c0_i32 = arith.constant 0 : i32
    %c0_i32_0 = arith.constant 0 : i32
    return %arg0, %c0_i32 : i32, i32
  }
  func.func @transform_1(%arg0: i32, %arg1: i32) -> (i32, i32) {
    %c0_i32 = arith.constant 0 : i32
    %c0_i32_0 = arith.constant 0 : i32
    return %c0_i32, %arg1 : i32, i32
  }
  func.func @transform_2(%arg0: i32, %arg1: i32) -> (i32, i32) {
    %c1_i32 = arith.constant 1 : i32
    %0 = arith.addi %arg1, %c1_i32 : i32
    %c0_i32 = arith.constant 0 : i32
    %c0_i32_0 = arith.constant 0 : i32
    return %c0_i32, %0 : i32, i32
  }
  func.func @transform_3(%arg0: i32, %arg1: i32) -> (i32, i32) {
    %c0_i32 = arith.constant 0 : i32
    %c0_i32_0 = arith.constant 0 : i32
    return %arg1, %c0_i32 : i32, i32
  }
  func.func @transform_4(%arg0: i32, %arg1: i32) -> (i32, i32) {
    %c0_i32 = arith.constant 0 : i32
    %c0_i32_0 = arith.constant 0 : i32
    return %arg0, %c0_i32 : i32, i32
  }
}

</mosaic_0001>

<llo_original>
// kernel: tpu_custom_call.1
$region0: #{tpu_custom_call.1}
  #allocation0 [shape = 'u32[]', space=smem, size = 0x4, offset = 0x4, fixed_abs, tag = 'smem constant byte address 0x4 - core index']
  #allocation1 [shape = 'u32[144,128]{1,0:T(1,128)}', space=vmem, size = 0x12000, scoped, tag = 'internal scratch']
  #allocation2 [shape = 'f32[8,128]{1,0:T(8,128)}', space=vmem, size = 0x1000, scoped, tag = 'scratch operand']
  %s0 = inlined_call_operand.hbm [shape: f32[8,128], index: 0, kind: input, shape index: {}]
  %s1 = inlined_call_operand.hbm [shape: f32[128,512], index: 1, kind: input, shape index: {}]
  %s2 = inlined_call_operand.hbm [shape: f32[128,512], index: 2, kind: input, shape index: {}]
  %s3 = inlined_call_operand.hbm [shape: f32[256,128], index: 3, kind: input, shape index: {}]
  %s4 = inlined_call_operand.hbm [shape: f32[8,128], index: 4, kind: output, shape index: {}]
  %s5 = sld [smem:[#allocation0]]
  $region50: #{tpu_custom_call.1} parent=0
    _
  %s7 = ssub.s32 1, %s5
  %s8 = scalar_select 0, %s7, %s5
  $region1: #{tpu_custom_call.1} parent=0
    #allocation3 [shape = 'u8[4096]{0}', space=vmem, size = 0x1000, scoped, tag = 'input window, operand 0, single buffered']
    #allocation4 [shape = 's32[1]{0}', space=sflag, size = 0x4, scoped, tag = 'scoped memory for tpu_custom_call.1']
    #allocation5 [shape = 's32[1]{0}', space=sflag, size = 0x4, scoped, tag = 'scoped memory for tpu_custom_call.1']
    #allocation6 [shape = 'u8[131072]{0}', space=vmem, size = 0x20000, scoped, tag = 'input window, operand 1, single buffered']
    #allocation7 [shape = 's32[1]{0}', space=sflag, size = 0x4, scoped, tag = 'scoped memory for tpu_custom_call.1']
    #allocation8 [shape = 'u8[131072]{0}', space=vmem, size = 0x20000, scoped, tag = 'input window, operand 2, single buffered']
    #allocation9 [shape = 'u8[131072]{0}', space=vmem, size = 0x20000, scoped, tag = 'input window, operand 3, single buffered']
    #allocation10 [shape = 's32[1]{0}', space=sflag, size = 0x4, scoped, tag = 'scoped memory for tpu_custom_call.1']
    #allocation11 [shape = 'u8[4096]{0}', space=vmem, size = 0x1000, scoped, tag = 'output window, operand 0, single buffered']
    %9 = vsyncpa [#allocation4], 0
    %10 = vsyncpa [#allocation7], 0
    %11 = vsyncpa [#allocation10], 0
    %12 = vsyncpa [#allocation5], 0
    // Predicated region
    $region2: #{tpu_custom_call.1} parent=1 // pred_check
      _
    $region3: #{tpu_custom_call.1} parent=1 // pred_check_branch
      %14 = sbr.rel (0) target = $region5
    $region4: #{tpu_custom_call.1} parent=1 // pred_region
      %s16 = ssub.s32 128, 128
      %17 = vsyncadd [#allocation4], %s16
      %s19 = sshll.u32 [#allocation3], 4
      %s20 = int_to_ptr.vmem [resolvable:$true] %s19
      %22 = dma.hbm_to_vmem [thread:$0]  %s0, 128, %s20, [#allocation4]
    $region5: #{tpu_custom_call.1} parent=1 // pred_fallthru
      _
    // Predicated region
    $region6: #{tpu_custom_call.1} parent=1 // pred_check
      _
    $region7: #{tpu_custom_call.1} parent=1 // pred_check_branch
      %24 = sbr.rel (0) target = $region9
    $region8: #{tpu_custom_call.1} parent=1 // pred_region
      %s26 = ssub.s32 4096, 4096
      %27 = vsyncadd [#allocation7], %s26
      %s28 = sshll.u32 [#allocation6], 4
      %s29 = int_to_ptr.vmem [resolvable:$true] %s28
      %34 = dma.hbm_to_vmem [thread:$0]  %s1, 4096, %s29, [#allocation7], 512, 256, 16
    $region9: #{tpu_custom_call.1} parent=1 // pred_fallthru
      _
    // Predicated region
    $region10: #{tpu_custom_call.1} parent=1 // pred_check
      _
    $region11: #{tpu_custom_call.1} parent=1 // pred_check_branch
      %36 = sbr.rel (0) target = $region13
    $region12: #{tpu_custom_call.1} parent=1 // pred_region
      %s37 = sadd.s32 0, 1
      %s38 = smul.u32 2, %s37
      %s40 = ssub.s32 4096, 4096
      %41 = vsyncadd [#allocation7], %s40
      %s42 = smul.addr %s38, 128
      %s43 = scalar_lea.hbm %s2, %s42
      %s44 = sshll.u32 [#allocation8], 4
      %s45 = int_to_ptr.vmem [resolvable:$true] %s44
      %50 = dma.hbm_to_vmem [thread:$0]  %s43, 4096, %s45, [#allocation7], 512, 256, 16
    $region13: #{tpu_custom_call.1} parent=1 // pred_fallthru
      _
    // Predicated region
    $region14: #{tpu_custom_call.1} parent=1 // pred_check
      _
    $region15: #{tpu_custom_call.1} parent=1 // pred_check_branch
      %52 = sbr.rel (0) target = $region17
    $region16: #{tpu_custom_call.1} parent=1 // pred_region
      %s54 = ssub.s32 4096, 4096
      %55 = vsyncadd [#allocation10], %s54
      %s56 = sshll.u32 [#allocation9], 4
      %s57 = int_to_ptr.vmem [resolvable:$true] %s56
      %62 = dma.hbm_to_vmem [thread:$0]  %s3, 4096, %s57, [#allocation10], 128, 128, 8
    $region17: #{tpu_custom_call.1} parent=1 // pred_fallthru
      _
    // Predicated region
    $region18: #{tpu_custom_call.1} parent=1 // pred_check
      _
    $region19: #{tpu_custom_call.1} parent=1 // pred_check_branch
      %64 = sbr.rel (0) target = $region21
    $region20: #{tpu_custom_call.1} parent=1 // pred_region
      %65 = dma.done [#allocation4], 128
    $region21: #{tpu_custom_call.1} parent=1 // pred_fallthru
      _
    // Predicated region
    $region22: #{tpu_custom_call.1} parent=1 // pred_check
      _
    $region23: #{tpu_custom_call.1} parent=1 // pred_check_branch
      %67 = sbr.rel (0) target = $region25
    $region24: #{tpu_custom_call.1} parent=1 // pred_region
      %68 = dma.done [#allocation7], 4096
    $region25: #{tpu_custom_call.1} parent=1 // pred_fallthru
      _
    // Predicated region
    $region26: #{tpu_custom_call.1} parent=1 // pred_check
      _
    $region27: #{tpu_custom_call.1} parent=1 // pred_check_branch
      %70 = sbr.rel (0) target = $region29
    $region28: #{tpu_custom_call.1} parent=1 // pred_region
      %71 = dma.done [#allocation7], 4096
    $region29: #{tpu_custom_call.1} parent=1 // pred_fallthru
      _
    // Predicated region
    $region30: #{tpu_custom_call.1} parent=1 // pred_check
      _
    $region31: #{tpu_custom_call.1} parent=1 // pred_check_branch
      %73 = sbr.rel (0) target = $region33
    $region32: #{tpu_custom_call.1} parent=1 // pred_region
      %74 = dma.done [#allocation10], 4096
    $region33: #{tpu_custom_call.1} parent=1 // pred_fallthru
      _
    %s75 = sadd.s32 0, 1
    %s76 = smul.u32 2, %s75
    %p77 = scmp.eq.s32.totalorder 0, 0
    // Predicated region
    $region34: #{tpu_custom_call.1} parent=1 // pred_check
      %p78 = pneg %p77
    $region35: #{tpu_custom_call.1} parent=1 // pred_check_branch
      %80 = sbr.rel (%p78) target = $region37
    $region36: #{tpu_custom_call.1} parent=1 // pred_region
      %81 = vst [vmem:[#allocation2] sm:$0xff] 0.0
    $region37: #{tpu_custom_call.1} parent=1 // pred_fallthru
      _
    %v82 = vld [vmem:[#allocation3] sm:$0xff]
    %v83 = vld [vmem:[#allocation6] sm:$0xff]
    %v84 = vld [vmem:[#allocation6 + $0x8] sm:$0xff]
    %v85 = vld [vmem:[#allocation6 + $0x10] sm:$0xff]
    %v86 = vld [vmem:[#allocation6 + $0x18] sm:$0xff]
    %v87 = vld [vmem:[#allocation6 + $0x20] sm:$0xff]
    %v88 = vld [vmem:[#allocation6 + $0x28] sm:$0xff]
    %v89 = vld [vmem:[#allocation6 + $0x30] sm:$0xff]
    %v90 = vld [vmem:[#allocation6 + $0x38] sm:$0xff]
    %v91 = vld [vmem:[#allocation6 + $0x40] sm:$0xff]
    %v92 = vld [vmem:[#allocation6 + $0x48] sm:$0xff]
    %v93 = vld [vmem:[#allocation6 + $0x50] sm:$0xff]
    %v94 = vld [vmem:[#allocation6 + $0x58] sm:$0xff]
    %v95 = vld [vmem:[#allocation6 + $0x60] sm:$0xff]
    %v96 = vld [vmem:[#allocation6 + $0x68] sm:$0xff]
    %v97 = vld [vmem:[#allocation6 + $0x70] sm:$0xff]
    %v98 = vld [vmem:[#allocation6 + $0x78] sm:$0xff]
    %v99 = vld [vmem:[#allocation6 + $0x80] sm:$0xff]
    %v100 = vld [vmem:[#allocation6 + $0x88] sm:$0xff]
    %v101 = vld [vmem:[#allocation6 + $0x90] sm:$0xff]
    %v102 = vld [vmem:[#allocation6 + $0x98] sm:$0xff]
    %v103 = vld [vmem:[#allocation6 + $0xa0] sm:$0xff]
    %v104 = vld [vmem:[#allocation6 + $0xa8] sm:$0xff]
    %v105 = vld [vmem:[#allocation6 + $0xb0] sm:$0xff]
    %v106 = vld [vmem:[#allocation6 + $0xb8] sm:$0xff]
    %v107 = vld [vmem:[#allocation6 + $0xc0] sm:$0xff]
    %v108 = vld [vmem:[#allocation6 + $0xc8] sm:$0xff]
    %v109 = vld [vmem:[#allocation6 + $0xd0] sm:$0xff]
    %v110 = vld [vmem:[#allocation6 + $0xd8] sm:$0xff]
    %v111 = vld [vmem:[#allocation6 + $0xe0] sm:$0xff]
    %v112 = vld [vmem:[#allocation6 + $0xe8] sm:$0xff]
    %v113 = vld [vmem:[#allocation6 + $0xf0] sm:$0xff]
    %v114 = vld [vmem:[#allocation6 + $0xf8] sm:$0xff]
    %115 = vmatprep.subr.mxu0 %v84
    %116 = vmatpush1.msra.mxu0 %v83
    %117 = vmatprep.subr.mxu0 %v86
    %118 = vmatpush1.msra.mxu0 %v85
    %119 = vmatprep.subr.mxu0 %v88
    %120 = vmatpush1.msra.mxu0 %v87
    %121 = vmatprep.subr.mxu0 %v90
    %122 = vmatpush1.msra.mxu0 %v89
    %123 = vmatprep.subr.mxu0 %v92
    %124 = vmatpush1.msra.mxu0 %v91
    %125 = vmatprep.subr.mxu0 %v94
    %126 = vmatpush1.msra.mxu0 %v93
    %127 = vmatprep.subr.mxu0 %v96
    %128 = vmatpush1.msra.mxu0 %v95
    %129 = vmatprep.subr.mxu0 %v98
    %130 = vmatpush1.msra.mxu0 %v97
    %131 = vmatprep.subr.mxu0 %v100
    %132 = vmatpush1.msra.mxu0 %v99
    %133 = vmatprep.subr.mxu0 %v102
    %134 = vmatpush1.msra.mxu0 %v101
    %135 = vmatprep.subr.mxu0 %v104
    %136 = vmatpush1.msra.mxu0 %v103
    %137 = vmatprep.subr.mxu0 %v106
    %138 = vmatpush1.msra.mxu0 %v105
    %139 = vmatprep.subr.mxu0 %v108
    %140 = vmatpush1.msra.mxu0 %v107
    %141 = vmatprep.subr.mxu0 %v110
    %142 = vmatpush1.msra.mxu0 %v109
    %143 = vmatprep.subr.mxu0 %v112
    %144 = vmatpush1.msra.mxu0 %v111
    %145 = vmatprep.subr.mxu0 %v114
    %146 = vmatpush1.msra.mxu0 %v113
    %147 = vmatprep.subr.mxu0 0.0
    %148 = vmatpush1.msra.mxu0 0.0
    %149 = vmatprep.subr.mxu0 0.0
    %150 = vmatpush1.msra.mxu0 0.0
    %151 = vmatprep.subr.mxu0 0.0
    %152 = vmatpush1.msra.mxu0 0.0
    %153 = vmatprep.subr.mxu0 0.0
    %154 = vmatpush1.msra.mxu0 0.0
    %155 = vmatprep.subr.mxu0 0.0
    %156 = vmatpush1.msra.mxu0 0.0
    %157 = vmatprep.subr.mxu0 0.0
    %158 = vmatpush1.msra.mxu0 0.0
    %159 = vmatprep.subr.mxu0 0.0
    %160 = vmatpush1.msra.mxu0 0.0
    %161 = vmatprep.subr.mxu0 0.0
    %162 = vmatpush1.msra.mxu0 0.0
    %163 = vmatprep.subr.mxu0 0.0
    %164 = vmatpush1.msra.mxu0 0.0
    %165 = vmatprep.subr.mxu0 0.0
    %166 = vmatpush1.msra.mxu0 0.0
    %167 = vmatprep.subr.mxu0 0.0
    %168 = vmatpush1.msra.mxu0 0.0
    %169 = vmatprep.subr.mxu0 0.0
    %170 = vmatpush1.msra.mxu0 0.0
    %171 = vmatprep.subr.mxu0 0.0
    %172 = vmatpush1.msra.mxu0 0.0
    %173 = vmatprep.subr.mxu0 0.0
    %174 = vmatpush1.msra.mxu0 0.0
    %175 = vmatprep.subr.mxu0 0.0
    %176 = vmatpush1.msra.mxu0 0.0
    %177 = vmatprep.subr.mxu0 0.0
    %178 = vmatpush1.msra.mxu0 0.0
    %179 = vmatprep.mubr.f32.mxu0 0.0
    %180 = vmatmul.mubr.f32.gmra.mrb[0].mxu0 %v82
    %v181 = vpop.f32.mrb[0].mxu0
    %v182 = vadd.f32 0.0, %v181
    %v183 = vpop.f32.mrb[0].mxu0
    %v184 = vadd.f32 0.0, %v183
    %185 = vdwg.mxu0
    %v186 = vld [vmem:[#allocation8] sm:$0xff]
    %v187 = vld [vmem:[#allocation8 + $0x8] sm:$0xff]
    %v188 = vld [vmem:[#allocation8 + $0x10] sm:$0xff]
    %v189 = vld [vmem:[#allocation8 + $0x18] sm:$0xff]
    %v190 = vld [vmem:[#allocation8 + $0x20] sm:$0xff]
    %v191 = vld [vmem:[#allocation8 + $0x28] sm:$0xff]
    %v192 = vld [vmem:[#allocation8 + $0x30] sm:$0xff]
    %v193 = vld [vmem:[#allocation8 + $0x38] sm:$0xff]
    %v194 = vld [vmem:[#allocation8 + $0x40] sm:$0xff]
    %v195 = vld [vmem:[#allocation8 + $0x48] sm:$0xff]
    %v196 = vld [vmem:[#allocation8 + $0x50] sm:$0xff]
    %v197 = vld [vmem:[#allocation8 + $0x58] sm:$0xff]
    %v198 = vld [vmem:[#allocation8 + $0x60] sm:$0xff]
    %v199 = vld [vmem:[#allocation8 + $0x68] sm:$0xff]
    %v200 = vld [vmem:[#allocation8 + $0x70] sm:$0xff]
    %v201 = vld [vmem:[#allocation8 + $0x78] sm:$0xff]
    %v202 = vld [vmem:[#allocation8 + $0x80] sm:$0xff]
    %v203 = vld [vmem:[#allocation8 + $0x88] sm:$0xff]
    %v204 = vld [vmem:[#allocation8 + $0x90] sm:$0xff]
    %v205 = vld [vmem:[#allocation8 + $0x98] sm:$0xff]
    %v206 = vld [vmem:[#allocation8 + $0xa0] sm:$0xff]
    %v207 = vld [vmem:[#allocation8 + $0xa8] sm:$0xff]
    %v208 = vld [vmem:[#allocation8 + $0xb0] sm:$0xff]
    %v209 = vld [vmem:[#allocation8 + $0xb8] sm:$0xff]
    %v210 = vld [vmem:[#allocation8 + $0xc0] sm:$0xff]
    %v211 = vld [vmem:[#allocation8 + $0xc8] sm:$0xff]
    %v212 = vld [vmem:[#allocation8 + $0xd0] sm:$0xff]
    %v213 = vld [vmem:[#allocation8 + $0xd8] sm:$0xff]
    %v214 = vld [vmem:[#allocation8 + $0xe0] sm:$0xff]
    %v215 = vld [vmem:[#allocation8 + $0xe8] sm:$0xff]
    %v216 = vld [vmem:[#allocation8 + $0xf0] sm:$0xff]
    %v217 = vld [vmem:[#allocation8 + $0xf8] sm:$0xff]
    %218 = vmatprep.subr.mxu0 %v187
    %219 = vmatpush1.msra.mxu0 %v186
    %220 = vmatprep.subr.mxu0 %v189
    %221 = vmatpush1.msra.mxu0 %v188
    %222 = vmatprep.subr.mxu0 %v191
    %223 = vmatpush1.msra.mxu0 %v190
    %224 = vmatprep.subr.mxu0 %v193
    %225 = vmatpush1.msra.mxu0 %v192
    %226 = vmatprep.subr.mxu0 %v195
    %227 = vmatpush1.msra.mxu0 %v194
    %228 = vmatprep.subr.mxu0 %v197
    %229 = vmatpush1.msra.mxu0 %v196
    %230 = vmatprep.subr.mxu0 %v199
    %231 = vmatpush1.msra.mxu0 %v198
    %232 = vmatprep.subr.mxu0 %v201
    %233 = vmatpush1.msra.mxu0 %v200
    %234 = vmatprep.subr.mxu0 %v203
    %235 = vmatpush1.msra.mxu0 %v202
    %236 = vmatprep.subr.mxu0 %v205
    %237 = vmatpush1.msra.mxu0 %v204
    %238 = vmatprep.subr.mxu0 %v207
    %239 = vmatpush1.msra.mxu0 %v206
    %240 = vmatprep.subr.mxu0 %v209
    %241 = vmatpush1.msra.mxu0 %v208
    %242 = vmatprep.subr.mxu0 %v211
    %243 = vmatpush1.msra.mxu0 %v210
    %244 = vmatprep.subr.mxu0 %v213
    %245 = vmatpush1.msra.mxu0 %v212
    %246 = vmatprep.subr.mxu0 %v215
    %247 = vmatpush1.msra.mxu0 %v214
    %248 = vmatprep.subr.mxu0 %v217
    %249 = vmatpush1.msra.mxu0 %v216
    %250 = vmatprep.subr.mxu0 0.0
    %251 = vmatpush1.msra.mxu0 0.0
    %252 = vmatprep.subr.mxu0 0.0
    %253 = vmatpush1.msra.mxu0 0.0
    %254 = vmatprep.subr.mxu0 0.0
    %255 = vmatpush1.msra.mxu0 0.0
    %256 = vmatprep.subr.mxu0 0.0
    %257 = vmatpush1.msra.mxu0 0.0
    %258 = vmatprep.subr.mxu0 0.0
    %259 = vmatpush1.msra.mxu0 0.0
    %260 = vmatprep.subr.mxu0 0.0
    %261 = vmatpush1.msra.mxu0 0.0
    %262 = vmatprep.subr.mxu0 0.0
    %263 = vmatpush1.msra.mxu0 0.0
    %264 = vmatprep.subr.mxu0 0.0
    %265 = vmatpush1.msra.mxu0 0.0
    %266 = vmatprep.subr.mxu0 0.0
    %267 = vmatpush1.msra.mxu0 0.0
    %268 = vmatprep.subr.mxu0 0.0
    %269 = vmatpush1.msra.mxu0 0.0
    %270 = vmatprep.subr.mxu0 0.0
    %271 = vmatpush1.msra.mxu0 0.0
    %272 = vmatprep.subr.mxu0 0.0
    %273 = vmatpush1.msra.mxu0 0.0
    %274 = vmatprep.subr.mxu0 0.0
    %275 = vmatpush1.msra.mxu0 0.0
    %276 = vmatprep.subr.mxu0 0.0
    %277 = vmatpush1.msra.mxu0 0.0
    %278 = vmatprep.subr.mxu0 0.0
    %279 = vmatpush1.msra.mxu0 0.0
    %280 = vmatprep.subr.mxu0 0.0
    %281 = vmatpush1.msra.mxu0 0.0
    %282 = vmatprep.mubr.f32.mxu0 0.0
    %283 = vmatmul.mubr.f32.gmra.mrb[0].mxu0 %v82
    %v284 = vpop.f32.mrb[0].mxu0
    %v285 = vadd.f32 0.0, %v284
    %v286 = vpop.f32.mrb[0].mxu0
    %v287 = vadd.f32 0.0, %v286
    %288 = vdwg.mxu0
    %v289 = vxor.u32 %v182, 2147483648
    %v290 = vxor.u32 %v184, 2147483648
    %v291 = vmul.f32 %v289, 1.442695
    %v292 = vpow.pop %v291
    %v293 = vmul.f32 %v290, 1.442695
    %v294 = vpow.pop %v293
    %v295 = vadd.f32 %v292, 1.0
    %v296 = vadd.f32 %v294, 1.0
    %v297 = vrcp.pop %v295
    %v298 = vmul.f32 1.0, %v297
    %v299 = vrcp.pop %v296
    %v300 = vmul.f32 1.0, %v299
    %v301 = vmul.f32 %v182, %v298
    %v302 = vmul.f32 %v184, %v300
    %v303 = vmul.f32 %v301, %v285
    %v304 = vmul.f32 %v302, %v287
    %v305 = vld [vmem:[#allocation2] sm:$0xff]
    %v306 = vld [vmem:[#allocation9] sm:$0xff]
    %v307 = vld [vmem:[#allocation9 + $0x8] sm:$0xff]
    %v308 = vld [vmem:[#allocation9 + $0x10] sm:$0xff]
    %v309 = vld [vmem:[#allocation9 + $0x18] sm:$0xff]
    %v310 = vld [vmem:[#allocation9 + $0x20] sm:$0xff]
    %v311 = vld [vmem:[#allocation9 + $0x28] sm:$0xff]
    %v312 = vld [vmem:[#allocation9 + $0x30] sm:$0xff]
    %v313 = vld [vmem:[#allocation9 + $0x38] sm:$0xff]
    %v314 = vld [vmem:[#allocation9 + $0x40] sm:$0xff]
    %v315 = vld [vmem:[#allocation9 + $0x48] sm:$0xff]
    %v316 = vld [vmem:[#allocation9 + $0x50] sm:$0xff]
    %v317 = vld [vmem:[#allocation9 + $0x58] sm:$0xff]
    %v318 = vld [vmem:[#allocation9 + $0x60] sm:$0xff]
    %v319 = vld [vmem:[#allocation9 + $0x68] sm:$0xff]
    %v320 = vld [vmem:[#allocation9 + $0x70] sm:$0xff]
    %v321 = vld [vmem:[#allocation9 + $0x78] sm:$0xff]
    %v322 = vld [vmem:[#allocation9 + $0x80] sm:$0xff]
    %v323 = vld [vmem:[#allocation9 + $0x88] sm:$0xff]
    %v324 = vld [vmem:[#allocation9 + $0x90] sm:$0xff]
    %v325 = vld [vmem:[#allocation9 + $0x98] sm:$0xff]
    %v326 = vld [vmem:[#allocation9 + $0xa0] sm:$0xff]
    %v327 = vld [vmem:[#allocation9 + $0xa8] sm:$0xff]
    %v328 = vld [vmem:[#allocation9 + $0xb0] sm:$0xff]
    %v329 = vld [vmem:[#allocation9 + $0xb8] sm:$0xff]
    %v330 = vld [vmem:[#allocation9 + $0xc0] sm:$0xff]
    %v331 = vld [vmem:[#allocation9 + $0xc8] sm:$0xff]
    %v332 = vld [vmem:[#allocation9 + $0xd0] sm:$0xff]
    %v333 = vld [vmem:[#allocation9 + $0xd8] sm:$0xff]
    %v334 = vld [vmem:[#allocation9 + $0xe0] sm:$0xff]
    %v335 = vld [vmem:[#allocation9 + $0xe8] sm:$0xff]
    %v336 = vld [vmem:[#allocation9 + $0xf0] sm:$0xff]
    %v337 = vld [vmem:[#allocation9 + $0xf8] sm:$0xff]
    %338 = vmatprep.subr.mxu0 0.0
    %339 = vmatpush1.msra.mxu0 %v306
    %340 = vmatprep.subr.mxu0 0.0
    %341 = vmatpush1.msra.mxu0 %v307
    %342 = vmatprep.subr.mxu0 0.0
    %343 = vmatpush1.msra.mxu0 %v308
    %344 = vmatprep.subr.mxu0 0.0
    %345 = vmatpush1.msra.mxu0 %v309
    %346 = vmatprep.subr.mxu0 0.0
    %347 = vmatpush1.msra.mxu0 %v310
    %348 = vmatprep.subr.mxu0 0.0
    %349 = vmatpush1.msra.mxu0 %v311
    %350 = vmatprep.subr.mxu0 0.0
    %351 = vmatpush1.msra.mxu0 %v312
    %352 = vmatprep.subr.mxu0 0.0
    %353 = vmatpush1.msra.mxu0 %v313
    %354 = vmatprep.subr.mxu0 0.0
    %355 = vmatpush1.msra.mxu0 %v314
    %356 = vmatprep.subr.mxu0 0.0
    %357 = vmatpush1.msra.mxu0 %v315
    %358 = vmatprep.subr.mxu0 0.0
    %359 = vmatpush1.msra.mxu0 %v316
    %360 = vmatprep.subr.mxu0 0.0
    %361 = vmatpush1.msra.mxu0 %v317
    %362 = vmatprep.subr.mxu0 0.0
    %363 = vmatpush1.msra.mxu0 %v318
    %364 = vmatprep.subr.mxu0 0.0
    %365 = vmatpush1.msra.mxu0 %v319
    %366 = vmatprep.subr.mxu0 0.0
    %367 = vmatpush1.msra.mxu0 %v320
    %368 = vmatprep.subr.mxu0 0.0
    %369 = vmatpush1.msra.mxu0 %v321
    %370 = vmatprep.subr.mxu0 0.0
    %371 = vmatpush1.msra.mxu0 %v322
    %372 = vmatprep.subr.mxu0 0.0
    %373 = vmatpush1.msra.mxu0 %v323
    %374 = vmatprep.subr.mxu0 0.0
    %375 = vmatpush1.msra.mxu0 %v324
    %376 = vmatprep.subr.mxu0 0.0
    %377 = vmatpush1.msra.mxu0 %v325
    %378 = vmatprep.subr.mxu0 0.0
    %379 = vmatpush1.msra.mxu0 %v326
    %380 = vmatprep.subr.mxu0 0.0
    %381 = vmatpush1.msra.mxu0 %v327
    %382 = vmatprep.subr.mxu0 0.0
    %383 = vmatpush1.msra.mxu0 %v328
    %384 = vmatprep.subr.mxu0 0.0
    %385 = vmatpush1.msra.mxu0 %v329
    %386 = vmatprep.subr.mxu0 0.0
    %387 = vmatpush1.msra.mxu0 %v330
    %388 = vmatprep.subr.mxu0 0.0
    %389 = vmatpush1.msra.mxu0 %v331
    %390 = vmatprep.subr.mxu0 0.0
    %391 = vmatpush1.msra.mxu0 %v332
    %392 = vmatprep.subr.mxu0 0.0
    %393 = vmatpush1.msra.mxu0 %v333
    %394 = vmatprep.subr.mxu0 0.0
    %395 = vmatpush1.msra.mxu0 %v334
    %396 = vmatprep.subr.mxu0 0.0
    %397 = vmatpush1.msra.mxu0 %v335
    %398 = vmatprep.subr.mxu0 0.0
    %399 = vmatpush1.msra.mxu0 %v336
    %400 = vmatprep.subr.mxu0 0.0
    %401 = vmatpush1.msra.mxu0 %v337
    %402 = vmatprep.mubr.f32.mxu0 %v304
    %403 = vmatmul.mubr.f32.gmra.mrb[0].mxu0 %v303
    %v404 = vpop.f32.mrb[0].mxu0
    %v405 = vadd.f32 0.0, %v404
    %v406 = vpop.f32.mrb[0].mxu0
    %407 = vdwg.mxu0
    %v408 = vadd.f32 %v305, %v405
    %409 = vst [vmem:[#allocation2] sm:$0xff] %v408
    // Predicated region
    $region38: #{tpu_custom_call.1} parent=1 // pred_check
      %p410 = pneg %p77
    $region39: #{tpu_custom_call.1} parent=1 // pred_check_branch
      %412 = sbr.rel (%p410) target = $region41
    $region40: #{tpu_custom_call.1} parent=1 // pred_region
      %v413 = vld [vmem:[#allocation2] sm:$0xff]
      %414 = vst [vmem:[#allocation11] sm:$0xff] %v413
    $region41: #{tpu_custom_call.1} parent=1 // pred_fallthru
      _
    // Predicated region
    $region42: #{tpu_custom_call.1} parent=1 // pred_check
      _
    $region43: #{tpu_custom_call.1} parent=1 // pred_check_branch
      %416 = sbr.rel (0) target = $region45
    $region44: #{tpu_custom_call.1} parent=1 // pred_region
      %s418 = ssub.s32 128, 128
      %419 = vsyncadd [#allocation5], %s418
      %s421 = sshll.u32 [#allocation11], 4
      %s422 = int_to_ptr.vmem [resolvable:$true] %s421
      %424 = dma.vmem_to_hbm [thread:$0]  %s422, 128, %s4, [#allocation5]
    $region45: #{tpu_custom_call.1} parent=1 // pred_fallthru
      _
    // Predicated region
    $region46: #{tpu_custom_call.1} parent=1 // pred_check
      _
    $region47: #{tpu_custom_call.1} parent=1 // pred_check_branch
      %426 = sbr.rel (0) target = $region49
    $region48: #{tpu_custom_call.1} parent=1 // pred_region
      %427 = dma.done [#allocation5], 128
    $region49: #{tpu_custom_call.1} parent=1 // pred_fallthru
      _
    %428 = vsyncpa [#allocation4], 1
    %429 = vsyncpa [#allocation7], 1
    %430 = vsyncpa [#allocation10], 1
    %431 = vsyncpa [#allocation5], 1

</llo_original>
